<compile_context>
chip_gen: v5e
topology: v5e:2x2
jax: 0.10.0
libtpu: 0.0.40
codegen_flags: <defaults>
</compile_context>

<pallas_src>
import functools

import jax
import jax.numpy as jnp
from jax.experimental import pallas as pl
from jax.experimental.pallas import tpu as pltpu


def _round_up(x, m):
    return ((x + m - 1) // m) * m


def _cdiv(a, b):
    return (a + b - 1) // b


def _default_grid_steps():
    """2 batch tiles on dual-TensorCore v7x, 1 on single-TC v5e/v6e (grid is a serial loop there)."""
    try:
        kind = jax.devices()[0].device_kind.lower()
        if "7" in kind:  # e.g. "tpu7x" / "tpu v7..."
            return 2
    except Exception:
        pass
    return 1


def _mlp_kernel(x_ref, w1_ref, b1_ref, w2_ref, b2_ref, w3_ref, b3_ref, o_ref):
    """Fused MLP hot path: bf16 matmuls on the MXU with f32 accumulation, bias+ReLU on the VPU."""
    x = x_ref[...]  # bf16 (bb, n_in)
    h1 = jnp.dot(x, w1_ref[...], preferred_element_type=jnp.float32) + b1_ref[...]
    h1 = jnp.maximum(h1, 0.0).astype(jnp.bfloat16)
    h2 = jnp.dot(h1, w2_ref[...], preferred_element_type=jnp.float32) + b2_ref[...]
    h2 = jnp.maximum(h2, 0.0).astype(jnp.bfloat16)
    out = jnp.dot(h2, w3_ref[...], preferred_element_type=jnp.float32) + b3_ref[...]
    o_ref[...] = out.astype(o_ref.dtype)  # full-128-lane (unmasked) store


def prepare_params(w1, b1, w2, b2, w3, b3):
    """One-time: zero-pad fan-out dims to 128 lanes, cast weights to bf16, biases to f32.

    Call once and reuse the returned tuple across forward calls (this is the hoisted
    per-call padding/casting the kernel review flagged).  Zero padding is exact:
    padded hidden units see bias 0 -> ReLU -> 0 and contribute nothing downstream.
    """
    n_in, n_mid = w1.shape
    n_out = w3.shape[1]
    n_mid_p = _round_up(n_mid, 128)
    n_out_p = _round_up(n_out, 128)
    bf, f32 = jnp.bfloat16, jnp.float32

    w1_p = jnp.zeros((n_in, n_mid_p), bf).at[:, :n_mid].set(w1.astype(bf))
    w2_p = jnp.zeros((n_mid_p, n_mid_p), bf).at[:n_mid, :n_mid].set(w2.astype(bf))
    w3_p = jnp.zeros((n_mid_p, n_out_p), bf).at[:n_mid, :n_out].set(w3.astype(bf))
    b1_p = jnp.zeros((1, n_mid_p), f32).at[:, :n_mid].set(jnp.reshape(b1, (1, n_mid)).astype(f32))
    b2_p = jnp.zeros((1, n_mid_p), f32).at[:, :n_mid].set(jnp.reshape(b2, (1, n_mid)).astype(f32))
    b3_p = jnp.zeros((1, n_out_p), f32).at[:, :n_out].set(jnp.reshape(b3, (1, n_out)).astype(f32))
    return (w1_p, b1_p, w2_p, b2_p, w3_p, b3_p)


@functools.partial(jax.jit, static_argnames=("n_out", "n_grid_steps", "max_block_b"))
def _mlp_forward_impl(x, w1_p, b1_p, w2_p, b2_p, w3_p, b3_p, *,
                      n_out, n_grid_steps, max_block_b):
    B, n_in = x.shape
    n_mid_p = w1_p.shape[1]
    n_out_p = w3_p.shape[1]
    bf = jnp.bfloat16

    # Batch tile: n_grid_steps equal tiles (1 on v5e/v6e, 2 on v7x), sublane-aligned,
    # capped so a huge batch still fits VMEM; never over-pads B by more than one tile's slack.
    n_steps = max(1, min(n_grid_steps, _cdiv(B, 8)))
    bb = min(_round_up(_cdiv(B, n_steps), 8), _round_up(max_block_b, 8))
    n_steps = _cdiv(B, bb)
    B_p = bb * n_steps

    x_bf = x.astype(bf)
    x_p = x_bf if B_p == B else jnp.zeros((B_p, n_in), bf).at[:B].set(x_bf)

    # Honest VMEM bound: double-buffered pipeline buffers + f32 intermediates, 4x headroom,
    # clamped to [8, 32] MiB (v5e default scoped VMEM is 16 MiB; v7x has 64 MiB physical/TC).
    bytes_pipeline = 2 * (
        bb * n_in * 2 + bb * n_out_p * 4
        + (n_in * n_mid_p + n_mid_p * n_mid_p + n_mid_p * n_out_p) * 2
        + (2 * n_mid_p + n_out_p) * 4
    )
    bytes_body = 2 * bb * n_mid_p * 4  # h1 / h2 f32 intermediates
    vmem_limit = int(min(max(4 * (bytes_pipeline + bytes_body), 8 * 1024 * 1024),
                         32 * 1024 * 1024))

    # Weights / biases are tiny: keep the full tensors resident every grid step
    # (constant block index).  If n_mid ever grows to the multi-thousand range,
    # switch these to pl.Buffered(1) and/or tile K with an f32 accumulator.
    def full(shape):
        return pl.BlockSpec(shape, lambda i: (0, 0))

    out_p = pl.pallas_call(
        _mlp_kernel,
        out_shape=jax.ShapeDtypeStruct((B_p, n_out_p), jnp.float32),
        grid_spec=pltpu.PrefetchScalarGridSpec(
            num_scalar_prefetch=0,
            grid=(n_steps,),
            in_specs=[
                pl.BlockSpec((bb, n_in), lambda i: (i, 0)),  # x tile: last dim = full array dim
                full((n_in, n_mid_p)),                       # w1
                full((1, n_mid_p)),                          # b1
                full((n_mid_p, n_mid_p)),                    # w2
                full((1, n_mid_p)),                          # b2
                full((n_mid_p, n_out_p)),                    # w3
                full((1, n_out_p)),                          # b3
            ],
            out_specs=pl.BlockSpec((bb, n_out_p), lambda i: (i, 0)),  # lane-dense store
        ),
        compiler_params=pltpu.CompilerParams(
            dimension_semantics=("parallel",),  # shard the (<=2) batch tiles across TensorCores
            vmem_limit_bytes=vmem_limit,
        ),
    )(x_p, w1_p, b1_p, w2_p, b2_p, w3_p, b3_p)

    if B_p == B and n_out_p == n_out:
        return out_p
    return out_p[:B, :n_out]


def mlp_forward(x, padded_params, n_out, *, n_grid_steps=None, max_block_b=1024):
    """x: (B, n_in) f32; padded_params: output of prepare_params(). Returns (B, n_out) f32."""
    if n_grid_steps is None:
        n_grid_steps = _default_grid_steps()
    return _mlp_forward_impl(x, *padded_params, n_out=int(n_out),
                             n_grid_steps=int(n_grid_steps), max_block_b=int(max_block_b))


def init_params(key, n_in, n_mid, n_out, dtype=jnp.float32):
    """Deterministic init mimicking nn.Linear's U(-1/sqrt(fan_in), +1/sqrt(fan_in))."""
    ks = jax.random.split(key, 6)

    def linear(kw, kb, fan_in, fan_out):
        bound = 1.0 / jnp.sqrt(jnp.float32(fan_in))
        # stored as (fan_in, fan_out) == PyTorch weight.T
        w = jax.random.uniform(kw, (fan_in, fan_out), dtype, -bound, bound)
        b = jax.random.uniform(kb, (1, fan_out), dtype, -bound, bound)
        return w, b

    w1, b1 = linear(ks[0], ks[1], n_in, n_mid)
    w2, b2 = linear(ks[2], ks[3], n_mid, n_mid)
    w3, b3 = linear(ks[4], ks[5], n_mid, n_out)
    return w1, b1, w2, b2, w3, b3


def reference_forward(x, w1, b1, w2, b2, w3, b3):
    """bf16-matmul / f32-accumulate reference matching the kernel's numerics."""
    bf = jnp.bfloat16
    h1 = jnp.maximum(jnp.dot(x.astype(bf), w1.astype(bf),
                             preferred_element_type=jnp.float32) + b1, 0.0)
    h2 = jnp.maximum(jnp.dot(h1.astype(bf), w2.astype(bf),
                             preferred_element_type=jnp.float32) + b2, 0.0)
    return jnp.dot(h2.astype(bf), w3.astype(bf), preferred_element_type=jnp.float32) + b3


if __name__ == "__main__":
    # Reversi-style sizes: 64 board cells -> n_in=64, hidden 128, 64 outputs.
    B, n_in, n_mid, n_out = 512, 64, 128, 64

    key = jax.random.PRNGKey(0)
    kx, kp = jax.random.split(key)
    x = jax.random.normal(kx, (B, n_in), jnp.float32)
    raw_params = init_params(kp, n_in, n_mid, n_out)

    # One-time padding/casting, hoisted out of the per-call forward path.
    padded_params = prepare_params(*raw_params)

    out = mlp_forward(x, padded_params, n_out)
    out = jax.block_until_ready(out)

    ref = reference_forward(x, *raw_params)
    assert out.shape == (B, n_out)
    assert jnp.allclose(out, ref, atol=2e-3, rtol=2e-3), "mismatch vs reference"

    print("KERNEL_OK")
</pallas_src>

<mosaic_0001>
module attributes {stable_mosaic.version = 11 : i64} {
  func.func @_mlp_kernel(%arg0: i32, %arg1: memref<512x64xbf16, #tpu.memory_space<vmem>>, %arg2: memref<64x128xbf16, #tpu.memory_space<vmem>>, %arg3: memref<1x128xf32, #tpu.memory_space<vmem>>, %arg4: memref<128x128xbf16, #tpu.memory_space<vmem>>, %arg5: memref<1x128xf32, #tpu.memory_space<vmem>>, %arg6: memref<128x128xbf16, #tpu.memory_space<vmem>>, %arg7: memref<1x128xf32, #tpu.memory_space<vmem>>, %arg8: memref<512x128xf32, #tpu.memory_space<vmem>>) attributes {dimension_semantics = [#tpu.dimension_semantics<parallel>], iteration_bounds = array<i64: 1>, scalar_prefetch = 0 : i64, scratch_operands = 0 : i64, tpu.core_type = #tpu.core_type<tc>, window_params = [{transform_indices = @transform_0, window_bounds = array<i64: 512, 64>}, {pipeline_mode = #tpu.pipeline_mode<synchronous>, transform_indices = @transform_1, window_bounds = array<i64: 64, 128>}, {pipeline_mode = #tpu.pipeline_mode<synchronous>, transform_indices = @transform_2, window_bounds = array<i64: 1, 128>}, {pipeline_mode = #tpu.pipeline_mode<synchronous>, transform_indices = @transform_3, window_bounds = array<i64: 128, 128>}, {pipeline_mode = #tpu.pipeline_mode<synchronous>, transform_indices = @transform_4, window_bounds = array<i64: 1, 128>}, {pipeline_mode = #tpu.pipeline_mode<synchronous>, transform_indices = @transform_5, window_bounds = array<i64: 128, 128>}, {pipeline_mode = #tpu.pipeline_mode<synchronous>, transform_indices = @transform_6, window_bounds = array<i64: 1, 128>}, {transform_indices = @transform_7, window_bounds = array<i64: 512, 128>}]} {
    %c0 = arith.constant 0 : index
    %c0_0 = arith.constant 0 : index
    %0 = vector.load %arg1[%c0, %c0_0] : memref<512x64xbf16, #tpu.memory_space<vmem>>, vector<512x64xbf16>
    %c0_1 = arith.constant 0 : index
    %c0_2 = arith.constant 0 : index
    %1 = vector.load %arg2[%c0_1, %c0_2] : memref<64x128xbf16, #tpu.memory_space<vmem>>, vector<64x128xbf16>
    %cst = arith.constant dense<0.000000e+00> : vector<512x128xf32>
    %2 = tpu.matmul %0, %1, %cst {dimension_numbers = #tpu.dot_dimension_numbers<[1], [0], [0], [1], [0, 0, 1, 1], [], []>} : vector<512x64xbf16>, vector<64x128xbf16>, vector<512x128xf32> -> vector<512x128xf32>
    %c0_3 = arith.constant 0 : index
    %c0_4 = arith.constant 0 : index
    %3 = vector.load %arg3[%c0_3, %c0_4] : memref<1x128xf32, #tpu.memory_space<vmem>>, vector<1x128xf32>
    %4 = vector.broadcast %3 : vector<1x128xf32> to vector<512x128xf32>
    %5 = arith.addf %2, %4 : vector<512x128xf32>
    %cst_5 = arith.constant 0.000000e+00 : f32
    %6 = vector.broadcast %cst_5 : f32 to vector<512x128xf32>
    %7 = arith.maximumf %5, %6 : vector<512x128xf32>
    %8 = arith.truncf %7 : vector<512x128xf32> to vector<512x128xbf16>
    %c0_6 = arith.constant 0 : index
    %c0_7 = arith.constant 0 : index
    %9 = vector.load %arg4[%c0_6, %c0_7] : memref<128x128xbf16, #tpu.memory_space<vmem>>, vector<128x128xbf16>
    %cst_8 = arith.constant dense<0.000000e+00> : vector<512x128xf32>
    %10 = tpu.matmul %8, %9, %cst_8 {dimension_numbers = #tpu.dot_dimension_numbers<[1], [0], [0], [1], [0, 0, 1, 1], [], []>} : vector<512x128xbf16>, vector<128x128xbf16>, vector<512x128xf32> -> vector<512x128xf32>
    %c0_9 = arith.constant 0 : index
    %c0_10 = arith.constant 0 : index
    %11 = vector.load %arg5[%c0_9, %c0_10] : memref<1x128xf32, #tpu.memory_space<vmem>>, vector<1x128xf32>
    %12 = vector.broadcast %11 : vector<1x128xf32> to vector<512x128xf32>
    %13 = arith.addf %10, %12 : vector<512x128xf32>
    %cst_11 = arith.constant 0.000000e+00 : f32
    %14 = vector.broadcast %cst_11 : f32 to vector<512x128xf32>
    %15 = arith.maximumf %13, %14 : vector<512x128xf32>
    %16 = arith.truncf %15 : vector<512x128xf32> to vector<512x128xbf16>
    %c0_12 = arith.constant 0 : index
    %c0_13 = arith.constant 0 : index
    %17 = vector.load %arg6[%c0_12, %c0_13] : memref<128x128xbf16, #tpu.memory_space<vmem>>, vector<128x128xbf16>
    %cst_14 = arith.constant dense<0.000000e+00> : vector<512x128xf32>
    %18 = tpu.matmul %16, %17, %cst_14 {dimension_numbers = #tpu.dot_dimension_numbers<[1], [0], [0], [1], [0, 0, 1, 1], [], []>} : vector<512x128xbf16>, vector<128x128xbf16>, vector<512x128xf32> -> vector<512x128xf32>
    %c0_15 = arith.constant 0 : index
    %c0_16 = arith.constant 0 : index
    %19 = vector.load %arg7[%c0_15, %c0_16] : memref<1x128xf32, #tpu.memory_space<vmem>>, vector<1x128xf32>
    %20 = vector.broadcast %19 : vector<1x128xf32> to vector<512x128xf32>
    %21 = arith.addf %18, %20 : vector<512x128xf32>
    %c0_17 = arith.constant 0 : index
    %c0_18 = arith.constant 0 : index
    %22 = vector.load %arg8[%c0_17, %c0_18] : memref<512x128xf32, #tpu.memory_space<vmem>>, vector<512x128xf32>
    tpu.vector_store %arg8[%c0_17, %c0_18], %21 {strides = array<i32>} : memref<512x128xf32, #tpu.memory_space<vmem>>, vector<512x128xf32>,
    return
  }
  func.func @transform_0(%arg0: i32) -> (i32, i32) {
    %c0_i32 = arith.constant 0 : i32
    %c0_i32_0 = arith.constant 0 : i32
    return %arg0, %c0_i32 : i32, i32
  }
  func.func @transform_1(%arg0: i32) -> (i32, i32) {
    %c0_i32 = arith.constant 0 : i32
    %c0_i32_0 = arith.constant 0 : i32
    %c0_i32_1 = arith.constant 0 : i32
    return %c0_i32, %c0_i32_0 : i32, i32
  }
  func.func @transform_2(%arg0: i32) -> (i32, i32) {
    %c0_i32 = arith.constant 0 : i32
    %c0_i32_0 = arith.constant 0 : i32
    %c0_i32_1 = arith.constant 0 : i32
    return %c0_i32, %c0_i32_0 : i32, i32
  }
  func.func @transform_3(%arg0: i32) -> (i32, i32) {
    %c0_i32 = arith.constant 0 : i32
    %c0_i32_0 = arith.constant 0 : i32
    %c0_i32_1 = arith.constant 0 : i32
    return %c0_i32, %c0_i32_0 : i32, i32
  }
  func.func @transform_4(%arg0: i32) -> (i32, i32) {
    %c0_i32 = arith.constant 0 : i32
    %c0_i32_0 = arith.constant 0 : i32
    %c0_i32_1 = arith.constant 0 : i32
    return %c0_i32, %c0_i32_0 : i32, i32
  }
  func.func @transform_5(%arg0: i32) -> (i32, i32) {
    %c0_i32 = arith.constant 0 : i32
    %c0_i32_0 = arith.constant 0 : i32
    %c0_i32_1 = arith.constant 0 : i32
    return %c0_i32, %c0_i32_0 : i32, i32
  }
  func.func @transform_6(%arg0: i32) -> (i32, i32) {
    %c0_i32 = arith.constant 0 : i32
    %c0_i32_0 = arith.constant 0 : i32
    %c0_i32_1 = arith.constant 0 : i32
    return %c0_i32, %c0_i32_0 : i32, i32
  }
  func.func @transform_7(%arg0: i32) -> (i32, i32) {
    %c0_i32 = arith.constant 0 : i32
    %c0_i32_0 = arith.constant 0 : i32
    return %arg0, %c0_i32 : i32, i32
  }
}

</mosaic_0001>

<llo_original>
// kernel: _mlp_forward_impl.1
$region0: #{_mlp_forward_impl.1}
  #allocation0 [shape = 'u32[]', space=smem, size = 0x4, offset = 0x4, fixed_abs, tag = 'smem constant byte address 0x4 - core index']
  #allocation1 [shape = 'u32[72,128]{1,0:T(1,128)}', space=vmem, size = 0x9000, scoped, tag = 'internal scratch']
  %s0 = inlined_call_operand.vmem [shape: bf16[512,64], index: 0, kind: input, shape index: {}]
  %s1 = inlined_call_operand.vmem [shape: bf16[64,128], index: 1, kind: input, shape index: {}]
  %s2 = inlined_call_operand.vmem [shape: f32[1,128], index: 2, kind: input, shape index: {}]
  %s3 = inlined_call_operand.vmem [shape: bf16[128,128], index: 3, kind: input, shape index: {}]
  %s4 = inlined_call_operand.vmem [shape: f32[1,128], index: 4, kind: input, shape index: {}]
  %s5 = inlined_call_operand.vmem [shape: bf16[128,128], index: 5, kind: input, shape index: {}]
  %s6 = inlined_call_operand.vmem [shape: f32[1,128], index: 6, kind: input, shape index: {}]
  %s7 = inlined_call_operand.vmem [shape: f32[512,128], index: 7, kind: output, shape index: {}]
  %s8 = sld [smem:[#allocation0]]
  $region38: #{_mlp_forward_impl.1} parent=0
    _
  %s10 = ssub.s32 1, %s8
  %s11 = scalar_select 0, %s10, %s8
  // Predicated region
  $region2: #{_mlp_forward_impl.1} parent=0 // pred_check
    _
  $region3: #{_mlp_forward_impl.1} parent=0 // pred_check_branch
    %13 = sbr.rel (0) target = $region5
  $region4: #{_mlp_forward_impl.1} parent=0 // pred_region
    _
  $region5: #{_mlp_forward_impl.1} parent=0 // pred_fallthru
    _
  // Predicated region
  $region6: #{_mlp_forward_impl.1} parent=0 // pred_check
    _
  $region7: #{_mlp_forward_impl.1} parent=0 // pred_check_branch
    %15 = sbr.rel (0) target = $region9
  $region8: #{_mlp_forward_impl.1} parent=0 // pred_region
    _
  $region9: #{_mlp_forward_impl.1} parent=0 // pred_fallthru
    _
  // Predicated region
  $region10: #{_mlp_forward_impl.1} parent=0 // pred_check
    _
  $region11: #{_mlp_forward_impl.1} parent=0 // pred_check_branch
    %17 = sbr.rel (0) target = $region13
  $region12: #{_mlp_forward_impl.1} parent=0 // pred_region
    _
  $region13: #{_mlp_forward_impl.1} parent=0 // pred_fallthru
    _
  // Predicated region
  $region14: #{_mlp_forward_impl.1} parent=0 // pred_check
    _
  $region15: #{_mlp_forward_impl.1} parent=0 // pred_check_branch
    %19 = sbr.rel (0) target = $region17
  $region16: #{_mlp_forward_impl.1} parent=0 // pred_region
    _
  $region17: #{_mlp_forward_impl.1} parent=0 // pred_fallthru
    _
  // Predicated region
  $region18: #{_mlp_forward_impl.1} parent=0 // pred_check
    _
  $region19: #{_mlp_forward_impl.1} parent=0 // pred_check_branch
    %21 = sbr.rel (0) target = $region21
  $region20: #{_mlp_forward_impl.1} parent=0 // pred_region
    _
  $region21: #{_mlp_forward_impl.1} parent=0 // pred_fallthru
    _
  // Predicated region
  $region22: #{_mlp_forward_impl.1} parent=0 // pred_check
    _
  $region23: #{_mlp_forward_impl.1} parent=0 // pred_check_branch
    %23 = sbr.rel (0) target = $region25
  $region24: #{_mlp_forward_impl.1} parent=0 // pred_region
    _
  $region25: #{_mlp_forward_impl.1} parent=0 // pred_fallthru
    _
  // Predicated region
  $region26: #{_mlp_forward_impl.1} parent=0 // pred_check
    _
  $region27: #{_mlp_forward_impl.1} parent=0 // pred_check_branch
    %25 = sbr.rel (0) target = $region29
  $region28: #{_mlp_forward_impl.1} parent=0 // pred_region
    _
  $region29: #{_mlp_forward_impl.1} parent=0 // pred_fallthru
    _
  %v27 = vld [vmem:[%s0] sm:$0xf]
  %v28 = vld [vmem:[%s0 + $0x4] sm:$0xf]
  %v29 = vld [vmem:[%s0 + $0x8] sm:$0xf]
  %v30 = vld [vmem:[%s0 + $0xc] sm:$0xf]
  %v31 = vld [vmem:[%s0 + $0x10] sm:$0xf]
  %v32 = vld [vmem:[%s0 + $0x14] sm:$0xf]
  %v33 = vld [vmem:[%s0 + $0x18] sm:$0xf]
  %v34 = vld [vmem:[%s0 + $0x1c] sm:$0xf]
  %v35 = vld [vmem:[%s0 + $0x20] sm:$0xf]
  %v36 = vld [vmem:[%s0 + $0x24] sm:$0xf]
  %v37 = vld [vmem:[%s0 + $0x28] sm:$0xf]
  %v38 = vld [vmem:[%s0 + $0x2c] sm:$0xf]
  %v39 = vld [vmem:[%s0 + $0x30] sm:$0xf]
  %v40 = vld [vmem:[%s0 + $0x34] sm:$0xf]
  %v41 = vld [vmem:[%s0 + $0x38] sm:$0xf]
  %v42 = vld [vmem:[%s0 + $0x3c] sm:$0xf]
  %v43 = vld [vmem:[%s0 + $0x40] sm:$0xf]
  %v44 = vld [vmem:[%s0 + $0x44] sm:$0xf]
  %v45 = vld [vmem:[%s0 + $0x48] sm:$0xf]
  %v46 = vld [vmem:[%s0 + $0x4c] sm:$0xf]
  %v47 = vld [vmem:[%s0 + $0x50] sm:$0xf]
  %v48 = vld [vmem:[%s0 + $0x54] sm:$0xf]
  %v49 = vld [vmem:[%s0 + $0x58] sm:$0xf]
  %v50 = vld [vmem:[%s0 + $0x5c] sm:$0xf]
  %v51 = vld [vmem:[%s0 + $0x60] sm:$0xf]
  %v52 = vld [vmem:[%s0 + $0x64] sm:$0xf]
  %v53 = vld [vmem:[%s0 + $0x68] sm:$0xf]
  %v54 = vld [vmem:[%s0 + $0x6c] sm:$0xf]
  %v55 = vld [vmem:[%s0 + $0x70] sm:$0xf]
  %v56 = vld [vmem:[%s0 + $0x74] sm:$0xf]
  %v57 = vld [vmem:[%s0 + $0x78] sm:$0xf]
  %v58 = vld [vmem:[%s0 + $0x7c] sm:$0xf]
  %v59 = vld [vmem:[%s0 + $0x80] sm:$0xf]
  %v60 = vld [vmem:[%s0 + $0x84] sm:$0xf]
  %v61 = vld [vmem:[%s0 + $0x88] sm:$0xf]
  %v62 = vld [vmem:[%s0 + $0x8c] sm:$0xf]
  %v63 = vld [vmem:[%s0 + $0x90] sm:$0xf]
  %v64 = vld [vmem:[%s0 + $0x94] sm:$0xf]
  %v65 = vld [vmem:[%s0 + $0x98] sm:$0xf]
  %v66 = vld [vmem:[%s0 + $0x9c] sm:$0xf]
  %v67 = vld [vmem:[%s0 + $0xa0] sm:$0xf]
  %v68 = vld [vmem:[%s0 + $0xa4] sm:$0xf]
  %v69 = vld [vmem:[%s0 + $0xa8] sm:$0xf]
  %v70 = vld [vmem:[%s0 + $0xac] sm:$0xf]
  %v71 = vld [vmem:[%s0 + $0xb0] sm:$0xf]
  %v72 = vld [vmem:[%s0 + $0xb4] sm:$0xf]
  %v73 = vld [vmem:[%s0 + $0xb8] sm:$0xf]
  %v74 = vld [vmem:[%s0 + $0xbc] sm:$0xf]
  %v75 = vld [vmem:[%s0 + $0xc0] sm:$0xf]
  %v76 = vld [vmem:[%s0 + $0xc4] sm:$0xf]
  %v77 = vld [vmem:[%s0 + $0xc8] sm:$0xf]
  %v78 = vld [vmem:[%s0 + $0xcc] sm:$0xf]
  %v79 = vld [vmem:[%s0 + $0xd0] sm:$0xf]
  %v80 = vld [vmem:[%s0 + $0xd4] sm:$0xf]
  %v81 = vld [vmem:[%s0 + $0xd8] sm:$0xf]
  %v82 = vld [vmem:[%s0 + $0xdc] sm:$0xf]
  %v83 = vld [vmem:[%s0 + $0xe0] sm:$0xf]
  %v84 = vld [vmem:[%s0 + $0xe4] sm:$0xf]
  %v85 = vld [vmem:[%s0 + $0xe8] sm:$0xf]
  %v86 = vld [vmem:[%s0 + $0xec] sm:$0xf]
  %v87 = vld [vmem:[%s0 + $0xf0] sm:$0xf]
  %v88 = vld [vmem:[%s0 + $0xf4] sm:$0xf]
  %v89 = vld [vmem:[%s0 + $0xf8] sm:$0xf]
  %v90 = vld [vmem:[%s0 + $0xfc] sm:$0xf]
  %v91 = vld [vmem:[%s1] sm:$0xf]
  %v92 = vld [vmem:[%s1 + $0x4] sm:$0xf]
  %v93 = vld [vmem:[%s1 + $0x8] sm:$0xf]
  %v94 = vld [vmem:[%s1 + $0xc] sm:$0xf]
  %v95 = vld [vmem:[%s1 + $0x10] sm:$0xf]
  %v96 = vld [vmem:[%s1 + $0x14] sm:$0xf]
  %v97 = vld [vmem:[%s1 + $0x18] sm:$0xf]
  %v98 = vld [vmem:[%s1 + $0x1c] sm:$0xf]
  %v99 = vld [vmem:[%s2] sm:$0x1]
  %v101 = vperm.slane %v99, 0
  %v167 = vunpack.c.l.b16 %v27
  %v168 = vunpack.c.l.b16 %v28
  %v169 = vunpack.c.l.b16 %v29
  %v170 = vunpack.c.l.b16 %v30
  %v171 = vunpack.c.l.b16 %v31
  %v172 = vunpack.c.l.b16 %v32
  %v173 = vunpack.c.l.b16 %v33
  %v174 = vunpack.c.l.b16 %v34
  %v175 = vunpack.c.l.b16 %v35
  %v176 = vunpack.c.l.b16 %v36
  %v177 = vunpack.c.l.b16 %v37
  %v178 = vunpack.c.l.b16 %v38
  %v179 = vunpack.c.l.b16 %v39
  %v180 = vunpack.c.l.b16 %v40
  %v181 = vunpack.c.l.b16 %v41
  %v182 = vunpack.c.l.b16 %v42
  %v183 = vunpack.c.l.b16 %v43
  %v184 = vunpack.c.l.b16 %v44
  %v185 = vunpack.c.l.b16 %v45
  %v186 = vunpack.c.l.b16 %v46
  %v187 = vunpack.c.l.b16 %v47
  %v188 = vunpack.c.l.b16 %v48
  %v189 = vunpack.c.l.b16 %v49
  %v190 = vunpack.c.l.b16 %v50
  %v191 = vunpack.c.l.b16 %v51
  %v192 = vunpack.c.l.b16 %v52
  %v193 = vunpack.c.l.b16 %v53
  %v194 = vunpack.c.l.b16 %v54
  %v195 = vunpack.c.l.b16 %v55
  %v196 = vunpack.c.l.b16 %v56
  %v197 = vunpack.c.l.b16 %v57
  %v198 = vunpack.c.l.b16 %v58
  %v199 = vunpack.c.l.b16 %v59
  %v200 = vunpack.c.l.b16 %v60
  %v201 = vunpack.c.l.b16 %v61
  %v202 = vunpack.c.l.b16 %v62
  %v203 = vunpack.c.l.b16 %v63
  %v204 = vunpack.c.l.b16 %v64
  %v205 = vunpack.c.l.b16 %v65
  %v206 = vunpack.c.l.b16 %v66
  %v207 = vunpack.c.l.b16 %v67
  %v208 = vunpack.c.l.b16 %v68
  %v209 = vunpack.c.l.b16 %v69
  %v210 = vunpack.c.l.b16 %v70
  %v211 = vunpack.c.l.b16 %v71
  %v212 = vunpack.c.l.b16 %v72
  %v213 = vunpack.c.l.b16 %v73
  %v214 = vunpack.c.l.b16 %v74
  %v215 = vunpack.c.l.b16 %v75
  %v216 = vunpack.c.l.b16 %v76
  %v217 = vunpack.c.l.b16 %v77
  %v218 = vunpack.c.l.b16 %v78
  %v219 = vunpack.c.l.b16 %v79
  %v220 = vunpack.c.l.b16 %v80
  %v221 = vunpack.c.l.b16 %v81
  %v222 = vunpack.c.l.b16 %v82
  %v223 = vunpack.c.l.b16 %v83
  %v224 = vunpack.c.l.b16 %v84
  %v225 = vunpack.c.l.b16 %v85
  %v226 = vunpack.c.l.b16 %v86
  %v227 = vunpack.c.l.b16 %v87
  %v228 = vunpack.c.l.b16 %v88
  %v229 = vunpack.c.l.b16 %v89
  %v230 = vunpack.c.l.b16 %v90
  %v231 = vpack.c.b16 %v168, %v167
  %v232 = vpack.c.b16 %v170, %v169
  %v233 = vpack.c.b16 %v172, %v171
  %v234 = vpack.c.b16 %v174, %v173
  %v235 = vpack.c.b16 %v176, %v175
  %v236 = vpack.c.b16 %v178, %v177
  %v237 = vpack.c.b16 %v180, %v179
  %v238 = vpack.c.b16 %v182, %v181
  %v239 = vpack.c.b16 %v184, %v183
  %v240 = vpack.c.b16 %v186, %v185
  %v241 = vpack.c.b16 %v188, %v187
  %v242 = vpack.c.b16 %v190, %v189
  %v243 = vpack.c.b16 %v192, %v191
  %v244 = vpack.c.b16 %v194, %v193
  %v245 = vpack.c.b16 %v196, %v195
  %v246 = vpack.c.b16 %v198, %v197
  %v247 = vpack.c.b16 %v200, %v199
  %v248 = vpack.c.b16 %v202, %v201
  %v249 = vpack.c.b16 %v204, %v203
  %v250 = vpack.c.b16 %v206, %v205
  %v251 = vpack.c.b16 %v208, %v207
  %v252 = vpack.c.b16 %v210, %v209
  %v253 = vpack.c.b16 %v212, %v211
  %v254 = vpack.c.b16 %v214, %v213
  %v255 = vpack.c.b16 %v216, %v215
  %v256 = vpack.c.b16 %v218, %v217
  %v257 = vpack.c.b16 %v220, %v219
  %v258 = vpack.c.b16 %v222, %v221
  %v259 = vpack.c.b16 %v224, %v223
  %v260 = vpack.c.b16 %v226, %v225
  %v261 = vpack.c.b16 %v228, %v227
  %v262 = vpack.c.b16 %v230, %v229
  %v271 = vunpack.c.l.b16 %v91
  %v272 = vunpack.c.l.b16 %v92
  %v273 = vunpack.c.l.b16 %v93
  %v274 = vunpack.c.l.b16 %v94
  %v275 = vunpack.c.l.b16 %v95
  %v276 = vunpack.c.l.b16 %v96
  %v277 = vunpack.c.l.b16 %v97
  %v278 = vunpack.c.l.b16 %v98
  %v279 = vpack.c.b16 %v272, %v271
  %v280 = vpack.c.b16 %v274, %v273
  %v281 = vpack.c.b16 %v276, %v275
  %v282 = vpack.c.b16 %v278, %v277
  %vm287 = vcmask 523264
  %v289 = vsel %vm287, %v231, 0
  %v292 = vsel %vm287, %v232, 0
  %v295 = vsel %vm287, %v233, 0
  %v298 = vsel %vm287, %v234, 0
  %v301 = vsel %vm287, %v235, 0
  %v304 = vsel %vm287, %v236, 0
  %v307 = vsel %vm287, %v237, 0
  %v310 = vsel %vm287, %v238, 0
  %v313 = vsel %vm287, %v239, 0
  %v316 = vsel %vm287, %v240, 0
  %v319 = vsel %vm287, %v241, 0
  %v322 = vsel %vm287, %v242, 0
  %v325 = vsel %vm287, %v243, 0
  %v328 = vsel %vm287, %v244, 0
  %v331 = vsel %vm287, %v245, 0
  %v334 = vsel %vm287, %v246, 0
  %v337 = vsel %vm287, %v247, 0
  %v340 = vsel %vm287, %v248, 0
  %v343 = vsel %vm287, %v249, 0
  %v346 = vsel %vm287, %v250, 0
  %v349 = vsel %vm287, %v251, 0
  %v352 = vsel %vm287, %v252, 0
  %v355 = vsel %vm287, %v253, 0
  %v358 = vsel %vm287, %v254, 0
  %v361 = vsel %vm287, %v255, 0
  %v364 = vsel %vm287, %v256, 0
  %v367 = vsel %vm287, %v257, 0
  %v370 = vsel %vm287, %v258, 0
  %v373 = vsel %vm287, %v259, 0
  %v376 = vsel %vm287, %v260, 0
  %v379 = vsel %vm287, %v261, 0
  %v382 = vsel %vm287, %v262, 0
  %384 = vmatpush.bf16.msra.mxu0 0
  %385 = vmatpush.bf16.msra.mxu0 0
  %386 = vmatpush.bf16.msra.mxu0 0
  %387 = vmatpush.bf16.msra.mxu0 0
  %388 = vmatpush.bf16.msra.mxu0 %v282
  %389 = vmatpush.bf16.msra.mxu0 %v281
  %390 = vmatpush.bf16.msra.mxu0 %v280
  %391 = vmatpush.bf16.msra.mxu0 %v279
  %392 = vmatmul.bf16.gmra.mxu0 %v289
  %v393 = vpop.f32.mrf.mxu0
  %v394 = vadd.f32 %v101, %v393
  %v395 = vpop.f32.mrf.mxu0
  %v396 = vadd.f32 %v101, %v395
  %397 = vmatmul.bf16.gmra.mxu0 %v292
  %v398 = vpop.f32.mrf.mxu0
  %v399 = vadd.f32 %v101, %v398
  %v400 = vpop.f32.mrf.mxu0
  %v401 = vadd.f32 %v101, %v400
  %402 = vmatmul.bf16.gmra.mxu0 %v295
  %v403 = vpop.f32.mrf.mxu0
  %v404 = vadd.f32 %v101, %v403
  %v405 = vpop.f32.mrf.mxu0
  %v406 = vadd.f32 %v101, %v405
  %407 = vmatmul.bf16.gmra.mxu0 %v298
  %v408 = vpop.f32.mrf.mxu0
  %v409 = vadd.f32 %v101, %v408
  %v410 = vpop.f32.mrf.mxu0
  %v411 = vadd.f32 %v101, %v410
  %412 = vmatmul.bf16.gmra.mxu0 %v301
  %v413 = vpop.f32.mrf.mxu0
  %v414 = vadd.f32 %v101, %v413
  %v415 = vpop.f32.mrf.mxu0
  %v416 = vadd.f32 %v101, %v415
  %417 = vmatmul.bf16.gmra.mxu0 %v304
  %v418 = vpop.f32.mrf.mxu0
  %v419 = vadd.f32 %v101, %v418
  %v420 = vpop.f32.mrf.mxu0
  %v421 = vadd.f32 %v101, %v420
  %422 = vmatmul.bf16.gmra.mxu0 %v307
  %v423 = vpop.f32.mrf.mxu0
  %v424 = vadd.f32 %v101, %v423
  %v425 = vpop.f32.mrf.mxu0
  %v426 = vadd.f32 %v101, %v425
  %427 = vmatmul.bf16.gmra.mxu0 %v310
  %v428 = vpop.f32.mrf.mxu0
  %v429 = vadd.f32 %v101, %v428
  %v430 = vpop.f32.mrf.mxu0
  %v431 = vadd.f32 %v101, %v430
  %432 = vmatmul.bf16.gmra.mxu0 %v313
  %v433 = vpop.f32.mrf.mxu0
  %v434 = vadd.f32 %v101, %v433
  %v435 = vpop.f32.mrf.mxu0
  %v436 = vadd.f32 %v101, %v435
  %437 = vmatmul.bf16.gmra.mxu0 %v316
  %v438 = vpop.f32.mrf.mxu0
  %v439 = vadd.f32 %v101, %v438
  %v440 = vpop.f32.mrf.mxu0
  %v441 = vadd.f32 %v101, %v440
  %442 = vmatmul.bf16.gmra.mxu0 %v319
  %v443 = vpop.f32.mrf.mxu0
  %v444 = vadd.f32 %v101, %v443
  %v445 = vpop.f32.mrf.mxu0
  %v446 = vadd.f32 %v101, %v445
  %447 = vmatmul.bf16.gmra.mxu0 %v322
  %v448 = vpop.f32.mrf.mxu0
  %v449 = vadd.f32 %v101, %v448
  %v450 = vpop.f32.mrf.mxu0
  %v451 = vadd.f32 %v101, %v450
  %452 = vmatmul.bf16.gmra.mxu0 %v325
  %v453 = vpop.f32.mrf.mxu0
  %v454 = vadd.f32 %v101, %v453
  %v455 = vpop.f32.mrf.mxu0
  %v456 = vadd.f32 %v101, %v455
  %457 = vmatmul.bf16.gmra.mxu0 %v328
  %v458 = vpop.f32.mrf.mxu0
  %v459 = vadd.f32 %v101, %v458
  %v460 = vpop.f32.mrf.mxu0
  %v461 = vadd.f32 %v101, %v460
  %462 = vmatmul.bf16.gmra.mxu0 %v331
  %v463 = vpop.f32.mrf.mxu0
  %v464 = vadd.f32 %v101, %v463
  %v465 = vpop.f32.mrf.mxu0
  %v466 = vadd.f32 %v101, %v465
  %467 = vmatmul.bf16.gmra.mxu0 %v334
  %v468 = vpop.f32.mrf.mxu0
  %v469 = vadd.f32 %v101, %v468
  %v470 = vpop.f32.mrf.mxu0
  %v471 = vadd.f32 %v101, %v470
  %472 = vmatmul.bf16.gmra.mxu0 %v337
  %v473 = vpop.f32.mrf.mxu0
  %v474 = vadd.f32 %v101, %v473
  %v475 = vpop.f32.mrf.mxu0
  %v476 = vadd.f32 %v101, %v475
  %477 = vmatmul.bf16.gmra.mxu0 %v340
  %v478 = vpop.f32.mrf.mxu0
  %v479 = vadd.f32 %v101, %v478
  %v480 = vpop.f32.mrf.mxu0
  %v481 = vadd.f32 %v101, %v480
  %482 = vmatmul.bf16.gmra.mxu0 %v343
  %v483 = vpop.f32.mrf.mxu0
  %v484 = vadd.f32 %v101, %v483
  %v485 = vpop.f32.mrf.mxu0
  %v486 = vadd.f32 %v101, %v485
  %487 = vmatmul.bf16.gmra.mxu0 %v346
  %v488 = vpop.f32.mrf.mxu0
  %v489 = vadd.f32 %v101, %v488
  %v490 = vpop.f32.mrf.mxu0
  %v491 = vadd.f32 %v101, %v490
  %492 = vmatmul.bf16.gmra.mxu0 %v349
  %v493 = vpop.f32.mrf.mxu0
  %v494 = vadd.f32 %v101, %v493
  %v495 = vpop.f32.mrf.mxu0
  %v496 = vadd.f32 %v101, %v495
  %497 = vmatmul.bf16.gmra.mxu0 %v352
  %v498 = vpop.f32.mrf.mxu0
  %v499 = vadd.f32 %v101, %v498
  %v500 = vpop.f32.mrf.mxu0
  %v501 = vadd.f32 %v101, %v500
  %502 = vmatmul.bf16.gmra.mxu0 %v355
  %v503 = vpop.f32.mrf.mxu0
  %v504 = vadd.f32 %v101, %v503
  %v505 = vpop.f32.mrf.mxu0
  %v506 = vadd.f32 %v101, %v505
  %507 = vmatmul.bf16.gmra.mxu0 %v358
  %v508 = vpop.f32.mrf.mxu0
  %v509 = vadd.f32 %v101, %v508
  %v510 = vpop.f32.mrf.mxu0
  %v511 = vadd.f32 %v101, %v510
  %512 = vmatmul.bf16.gmra.mxu0 %v361
  %v513 = vpop.f32.mrf.mxu0
  %v514 = vadd.f32 %v101, %v513
  %v515 = vpop.f32.mrf.mxu0
  %v516 = vadd.f32 %v101, %v515
  %517 = vmatmul.bf16.gmra.mxu0 %v364
  %v518 = vpop.f32.mrf.mxu0
  %v519 = vadd.f32 %v101, %v518
  %v520 = vpop.f32.mrf.mxu0
  %v521 = vadd.f32 %v101, %v520
  %522 = vmatmul.bf16.gmra.mxu0 %v367
  %v523 = vpop.f32.mrf.mxu0
  %v524 = vadd.f32 %v101, %v523
  %v525 = vpop.f32.mrf.mxu0
  %v526 = vadd.f32 %v101, %v525
  %527 = vmatmul.bf16.gmra.mxu0 %v370
  %v528 = vpop.f32.mrf.mxu0
  %v529 = vadd.f32 %v101, %v528
  %v530 = vpop.f32.mrf.mxu0
  %v531 = vadd.f32 %v101, %v530
  %532 = vmatmul.bf16.gmra.mxu0 %v373
  %v533 = vpop.f32.mrf.mxu0
  %v534 = vadd.f32 %v101, %v533
  %v535 = vpop.f32.mrf.mxu0
  %v536 = vadd.f32 %v101, %v535
  %537 = vmatmul.bf16.gmra.mxu0 %v376
  %v538 = vpop.f32.mrf.mxu0
  %v539 = vadd.f32 %v101, %v538
  %v540 = vpop.f32.mrf.mxu0
  %v541 = vadd.f32 %v101, %v540
  %542 = vmatmul.bf16.gmra.mxu0 %v379
  %v543 = vpop.f32.mrf.mxu0
  %v544 = vadd.f32 %v101, %v543
  %v545 = vpop.f32.mrf.mxu0
  %v546 = vadd.f32 %v101, %v545
  %547 = vmatmul.bf16.gmra.mxu0 %v382
  %v548 = vpop.f32.mrf.mxu0
  %v549 = vadd.f32 %v101, %v548
  %v550 = vpop.f32.mrf.mxu0
  %v551 = vadd.f32 %v101, %v550
  %552 = vdwg.mxu0
  %v553 = vmax.f32 %v394, 0.0
  %v554 = vmax.f32 %v396, 0.0
  %v555 = vmax.f32 %v399, 0.0
  %v556 = vmax.f32 %v401, 0.0
  %v557 = vmax.f32 %v404, 0.0
  %v558 = vmax.f32 %v406, 0.0
  %v559 = vmax.f32 %v409, 0.0
  %v560 = vmax.f32 %v411, 0.0
  %v561 = vmax.f32 %v414, 0.0
  %v562 = vmax.f32 %v416, 0.0
  %v563 = vmax.f32 %v419, 0.0
  %v564 = vmax.f32 %v421, 0.0
  %v565 = vmax.f32 %v424, 0.0
  %v566 = vmax.f32 %v426, 0.0
  %v567 = vmax.f32 %v429, 0.0
  %v568 = vmax.f32 %v431, 0.0
  %v569 = vmax.f32 %v434, 0.0
  %v570 = vmax.f32 %v436, 0.0
  %v571 = vmax.f32 %v439, 0.0
  %v572 = vmax.f32 %v441, 0.0
  %v573 = vmax.f32 %v444, 0.0
  %v574 = vmax.f32 %v446, 0.0
  %v575 = vmax.f32 %v449, 0.0
  %v576 = vmax.f32 %v451, 0.0
  %v577 = vmax.f32 %v454, 0.0
  %v578 = vmax.f32 %v456, 0.0
  %v579 = vmax.f32 %v459, 0.0
  %v580 = vmax.f32 %v461, 0.0
  %v581 = vmax.f32 %v464, 0.0
  %v582 = vmax.f32 %v466, 0.0
  %v583 = vmax.f32 %v469, 0.0
  %v584 = vmax.f32 %v471, 0.0
  %v585 = vmax.f32 %v474, 0.0
  %v586 = vmax.f32 %v476, 0.0
  %v587 = vmax.f32 %v479, 0.0
  %v588 = vmax.f32 %v481, 0.0
  %v589 = vmax.f32 %v484, 0.0
  %v590 = vmax.f32 %v486, 0.0
  %v591 = vmax.f32 %v489, 0.0
  %v592 = vmax.f32 %v491, 0.0
  %v593 = vmax.f32 %v494, 0.0
  %v594 = vmax.f32 %v496, 0.0
  %v595 = vmax.f32 %v499, 0.0
  %v596 = vmax.f32 %v501, 0.0
  %v597 = vmax.f32 %v504, 0.0
  %v598 = vmax.f32 %v506, 0.0
  %v599 = vmax.f32 %v509, 0.0
  %v600 = vmax.f32 %v511, 0.0
  %v601 = vmax.f32 %v514, 0.0
  %v602 = vmax.f32 %v516, 0.0
  %v603 = vmax.f32 %v519, 0.0
  %v604 = vmax.f32 %v521, 0.0
  %v605 = vmax.f32 %v524, 0.0
  %v606 = vmax.f32 %v526, 0.0
  %v607 = vmax.f32 %v529, 0.0
  %v608 = vmax.f32 %v531, 0.0
  %v609 = vmax.f32 %v534, 0.0
  %v610 = vmax.f32 %v536, 0.0
  %v611 = vmax.f32 %v539, 0.0
  %v612 = vmax.f32 %v541, 0.0
  %v613 = vmax.f32 %v544, 0.0
  %v614 = vmax.f32 %v546, 0.0
  %v615 = vmax.f32 %v549, 0.0
  %v616 = vmax.f32 %v551, 0.0
  %v617 = vpack.c.bf16 %v554, %v553
  %v618 = vpack.c.bf16 %v556, %v555
  %v619 = vpack.c.bf16 %v558, %v557
  %v620 = vpack.c.bf16 %v560, %v559
  %v621 = vpack.c.bf16 %v562, %v561
  %v622 = vpack.c.bf16 %v564, %v563
  %v623 = vpack.c.bf16 %v566, %v565
  %v624 = vpack.c.bf16 %v568, %v567
  %v625 = vpack.c.bf16 %v570, %v569
  %v626 = vpack.c.bf16 %v572, %v571
  %v627 = vpack.c.bf16 %v574, %v573
  %v628 = vpack.c.bf16 %v576, %v575
  %v629 = vpack.c.bf16 %v578, %v577
  %v630 = vpack.c.bf16 %v580, %v579
  %v631 = vpack.c.bf16 %v582, %v581
  %v632 = vpack.c.bf16 %v584, %v583
  %v633 = vpack.c.bf16 %v586, %v585
  %v634 = vpack.c.bf16 %v588, %v587
  %v635 = vpack.c.bf16 %v590, %v589
  %v636 = vpack.c.bf16 %v592, %v591
  %v637 = vpack.c.bf16 %v594, %v593
  %v638 = vpack.c.bf16 %v596, %v595
  %v639 = vpack.c.bf16 %v598, %v597
  %v640 = vpack.c.bf16 %v600, %v599
  %v641 = vpack.c.bf16 %v602, %v601
  %v642 = vpack.c.bf16 %v604, %v603
  %v643 = vpack.c.bf16 %v606, %v605
  %v644 = vpack.c.bf16 %v608, %v607
  %v645 = vpack.c.bf16 %v610, %v609
  %v646 = vpack.c.bf16 %v612, %v611
  %v647 = vpack.c.bf16 %v614, %v613
  %v648 = vpack.c.bf16 %v616, %v615
  %v649 = vld [vmem:[%s3] sm:$0xf]
  %v650 = vld [vmem:[%s3 + $0x4] sm:$0xf]
  %v651 = vld [vmem:[%s3 + $0x8] sm:$0xf]
  %v652 = vld [vmem:[%s3 + $0xc] sm:$0xf]
  %v653 = vld [vmem:[%s3 + $0x10] sm:$0xf]
  %v654 = vld [vmem:[%s3 + $0x14] sm:$0xf]
  %v655 = vld [vmem:[%s3 + $0x18] sm:$0xf]
  %v656 = vld [vmem:[%s3 + $0x1c] sm:$0xf]
  %v657 = vld [vmem:[%s3 + $0x20] sm:$0xf]
  %v658 = vld [vmem:[%s3 + $0x24] sm:$0xf]
  %v659 = vld [vmem:[%s3 + $0x28] sm:$0xf]
  %v660 = vld [vmem:[%s3 + $0x2c] sm:$0xf]
  %v661 = vld [vmem:[%s3 + $0x30] sm:$0xf]
  %v662 = vld [vmem:[%s3 + $0x34] sm:$0xf]
  %v663 = vld [vmem:[%s3 + $0x38] sm:$0xf]
  %v664 = vld [vmem:[%s3 + $0x3c] sm:$0xf]
  %v665 = vld [vmem:[%s4] sm:$0x1]
  %v667 = vperm.slane %v665, 0
  %v685 = vunpack.c.l.b16 %v649
  %v686 = vunpack.c.l.b16 %v650
  %v687 = vunpack.c.l.b16 %v651
  %v688 = vunpack.c.l.b16 %v652
  %v689 = vunpack.c.l.b16 %v653
  %v690 = vunpack.c.l.b16 %v654
  %v691 = vunpack.c.l.b16 %v655
  %v692 = vunpack.c.l.b16 %v656
  %v693 = vunpack.c.l.b16 %v657
  %v694 = vunpack.c.l.b16 %v658
  %v695 = vunpack.c.l.b16 %v659
  %v696 = vunpack.c.l.b16 %v660
  %v697 = vunpack.c.l.b16 %v661
  %v698 = vunpack.c.l.b16 %v662
  %v699 = vunpack.c.l.b16 %v663
  %v700 = vunpack.c.l.b16 %v664
  %v701 = vpack.c.b16 %v686, %v685
  %v702 = vpack.c.b16 %v688, %v687
  %v703 = vpack.c.b16 %v690, %v689
  %v704 = vpack.c.b16 %v692, %v691
  %v705 = vpack.c.b16 %v694, %v693
  %v706 = vpack.c.b16 %v696, %v695
  %v707 = vpack.c.b16 %v698, %v697
  %v708 = vpack.c.b16 %v700, %v699
  %717 = vmatpush.bf16.msra.mxu0 %v708
  %718 = vmatpush.bf16.msra.mxu0 %v707
  %719 = vmatpush.bf16.msra.mxu0 %v706
  %720 = vmatpush.bf16.msra.mxu0 %v705
  %721 = vmatpush.bf16.msra.mxu0 %v704
  %722 = vmatpush.bf16.msra.mxu0 %v703
  %723 = vmatpush.bf16.msra.mxu0 %v702
  %724 = vmatpush.bf16.msra.mxu0 %v701
  %725 = vmatmul.bf16.gmra.mxu0 %v617
  %v726 = vpop.f32.mrf.mxu0
  %v727 = vadd.f32 %v667, %v726
  %v728 = vpop.f32.mrf.mxu0
  %v729 = vadd.f32 %v667, %v728
  %730 = vmatmul.bf16.gmra.mxu0 %v618
  %v731 = vpop.f32.mrf.mxu0
  %v732 = vadd.f32 %v667, %v731
  %v733 = vpop.f32.mrf.mxu0
  %v734 = vadd.f32 %v667, %v733
  %735 = vmatmul.bf16.gmra.mxu0 %v619
  %v736 = vpop.f32.mrf.mxu0
  %v737 = vadd.f32 %v667, %v736
  %v738 = vpop.f32.mrf.mxu0
  %v739 = vadd.f32 %v667, %v738
  %740 = vmatmul.bf16.gmra.mxu0 %v620
  %v741 = vpop.f32.mrf.mxu0
  %v742 = vadd.f32 %v667, %v741
  %v743 = vpop.f32.mrf.mxu0
  %v744 = vadd.f32 %v667, %v743
  %745 = vmatmul.bf16.gmra.mxu0 %v621
  %v746 = vpop.f32.mrf.mxu0
  %v747 = vadd.f32 %v667, %v746
  %v748 = vpop.f32.mrf.mxu0
  %v749 = vadd.f32 %v667, %v748
  %750 = vmatmul.bf16.gmra.mxu0 %v622
  %v751 = vpop.f32.mrf.mxu0
  %v752 = vadd.f32 %v667, %v751
  %v753 = vpop.f32.mrf.mxu0
  %v754 = vadd.f32 %v667, %v753
  %755 = vmatmul.bf16.gmra.mxu0 %v623
  %v756 = vpop.f32.mrf.mxu0
  %v757 = vadd.f32 %v667, %v756
  %v758 = vpop.f32.mrf.mxu0
  %v759 = vadd.f32 %v667, %v758
  %760 = vmatmul.bf16.gmra.mxu0 %v624
  %v761 = vpop.f32.mrf.mxu0
  %v762 = vadd.f32 %v667, %v761
  %v763 = vpop.f32.mrf.mxu0
  %v764 = vadd.f32 %v667, %v763
  %765 = vmatmul.bf16.gmra.mxu0 %v625
  %v766 = vpop.f32.mrf.mxu0
  %v767 = vadd.f32 %v667, %v766
  %v768 = vpop.f32.mrf.mxu0
  %v769 = vadd.f32 %v667, %v768
  %770 = vmatmul.bf16.gmra.mxu0 %v626
  %v771 = vpop.f32.mrf.mxu0
  %v772 = vadd.f32 %v667, %v771
  %v773 = vpop.f32.mrf.mxu0
  %v774 = vadd.f32 %v667, %v773
  %775 = vmatmul.bf16.gmra.mxu0 %v627
  %v776 = vpop.f32.mrf.mxu0
  %v777 = vadd.f32 %v667, %v776
  %v778 = vpop.f32.mrf.mxu0
  %v779 = vadd.f32 %v667, %v778
  %780 = vmatmul.bf16.gmra.mxu0 %v628
  %v781 = vpop.f32.mrf.mxu0
  %v782 = vadd.f32 %v667, %v781
  %v783 = vpop.f32.mrf.mxu0
  %v784 = vadd.f32 %v667, %v783
  %785 = vmatmul.bf16.gmra.mxu0 %v629
  %v786 = vpop.f32.mrf.mxu0
  %v787 = vadd.f32 %v667, %v786
  %v788 = vpop.f32.mrf.mxu0
  %v789 = vadd.f32 %v667, %v788
  %790 = vmatmul.bf16.gmra.mxu0 %v630
  %v791 = vpop.f32.mrf.mxu0
  %v792 = vadd.f32 %v667, %v791
  %v793 = vpop.f32.mrf.mxu0
  %v794 = vadd.f32 %v667, %v793
  %795 = vmatmul.bf16.gmra.mxu0 %v631
  %v796 = vpop.f32.mrf.mxu0
  %v797 = vadd.f32 %v667, %v796
  %v798 = vpop.f32.mrf.mxu0
  %v799 = vadd.f32 %v667, %v798
  %800 = vmatmul.bf16.gmra.mxu0 %v632
  %v801 = vpop.f32.mrf.mxu0
  %v802 = vadd.f32 %v667, %v801
  %v803 = vpop.f32.mrf.mxu0
  %v804 = vadd.f32 %v667, %v803
  %805 = vmatmul.bf16.gmra.mxu0 %v633
  %v806 = vpop.f32.mrf.mxu0
  %v807 = vadd.f32 %v667, %v806
  %v808 = vpop.f32.mrf.mxu0
  %v809 = vadd.f32 %v667, %v808
  %810 = vmatmul.bf16.gmra.mxu0 %v634
  %v811 = vpop.f32.mrf.mxu0
  %v812 = vadd.f32 %v667, %v811
  %v813 = vpop.f32.mrf.mxu0
  %v814 = vadd.f32 %v667, %v813
  %815 = vmatmul.bf16.gmra.mxu0 %v635
  %v816 = vpop.f32.mrf.mxu0
  %v817 = vadd.f32 %v667, %v816
  %v818 = vpop.f32.mrf.mxu0
  %v819 = vadd.f32 %v667, %v818
  %820 = vmatmul.bf16.gmra.mxu0 %v636
  %v821 = vpop.f32.mrf.mxu0
  %v822 = vadd.f32 %v667, %v821
  %v823 = vpop.f32.mrf.mxu0
  %v824 = vadd.f32 %v667, %v823
  %825 = vmatmul.bf16.gmra.mxu0 %v637
  %v826 = vpop.f32.mrf.mxu0
  %v827 = vadd.f32 %v667, %v826
  %v828 = vpop.f32.mrf.mxu0
  %v829 = vadd.f32 %v667, %v828
  %830 = vmatmul.bf16.gmra.mxu0 %v638
  %v831 = vpop.f32.mrf.mxu0
  %v832 = vadd.f32 %v667, %v831
  %v833 = vpop.f32.mrf.mxu0
  %v834 = vadd.f32 %v667, %v833
  %835 = vmatmul.bf16.gmra.mxu0 %v639
  %v836 = vpop.f32.mrf.mxu0
  %v837 = vadd.f32 %v667, %v836
  %v838 = vpop.f32.mrf.mxu0
  %v839 = vadd.f32 %v667, %v838
  %840 = vmatmul.bf16.gmra.mxu0 %v640
  %v841 = vpop.f32.mrf.mxu0
  %v842 = vadd.f32 %v667, %v841
  %v843 = vpop.f32.mrf.mxu0
  %v844 = vadd.f32 %v667, %v843
  %845 = vmatmul.bf16.gmra.mxu0 %v641
  %v846 = vpop.f32.mrf.mxu0
  %v847 = vadd.f32 %v667, %v846
  %v848 = vpop.f32.mrf.mxu0
  %v849 = vadd.f32 %v667, %v848
  %850 = vmatmul.bf16.gmra.mxu0 %v642
  %v851 = vpop.f32.mrf.mxu0
  %v852 = vadd.f32 %v667, %v851
  %v853 = vpop.f32.mrf.mxu0
  %v854 = vadd.f32 %v667, %v853
  %855 = vmatmul.bf16.gmra.mxu0 %v643
  %v856 = vpop.f32.mrf.mxu0
  %v857 = vadd.f32 %v667, %v856
  %v858 = vpop.f32.mrf.mxu0
  %v859 = vadd.f32 %v667, %v858
  %860 = vmatmul.bf16.gmra.mxu0 %v644
  %v861 = vpop.f32.mrf.mxu0
  %v862 = vadd.f32 %v667, %v861
  %v863 = vpop.f32.mrf.mxu0
  %v864 = vadd.f32 %v667, %v863
  %865 = vmatmul.bf16.gmra.mxu0 %v645
  %v866 = vpop.f32.mrf.mxu0
  %v867 = vadd.f32 %v667, %v866
  %v868 = vpop.f32.mrf.mxu0
  %v869 = vadd.f32 %v667, %v868
  %870 = vmatmul.bf16.gmra.mxu0 %v646
  %v871 = vpop.f32.mrf.mxu0
  %v872 = vadd.f32 %v667, %v871
  %v873 = vpop.f32.mrf.mxu0
  %v874 = vadd.f32 %v667, %v873
  %875 = vmatmul.bf16.gmra.mxu0 %v647
  %v876 = vpop.f32.mrf.mxu0
  %v877 = vadd.f32 %v667, %v876
  %v878 = vpop.f32.mrf.mxu0
  %v879 = vadd.f32 %v667, %v878
  %880 = vmatmul.bf16.gmra.mxu0 %v648
  %v881 = vpop.f32.mrf.mxu0
  %v882 = vadd.f32 %v667, %v881
  %v883 = vpop.f32.mrf.mxu0
  %v884 = vadd.f32 %v667, %v883
  %885 = vdwg.mxu0
  %v886 = vmax.f32 %v727, 0.0
  %v887 = vmax.f32 %v729, 0.0
  %v888 = vmax.f32 %v732, 0.0
  %v889 = vmax.f32 %v734, 0.0
  %v890 = vmax.f32 %v737, 0.0
  %v891 = vmax.f32 %v739, 0.0
  %v892 = vmax.f32 %v742, 0.0
  %v893 = vmax.f32 %v744, 0.0
  %v894 = vmax.f32 %v747, 0.0
  %v895 = vmax.f32 %v749, 0.0
  %v896 = vmax.f32 %v752, 0.0
  %v897 = vmax.f32 %v754, 0.0
  %v898 = vmax.f32 %v757, 0.0
  %v899 = vmax.f32 %v759, 0.0
  %v900 = vmax.f32 %v762, 0.0
  %v901 = vmax.f32 %v764, 0.0
  %v902 = vmax.f32 %v767, 0.0
  %v903 = vmax.f32 %v769, 0.0
  %v904 = vmax.f32 %v772, 0.0
  %v905 = vmax.f32 %v774, 0.0
  %v906 = vmax.f32 %v777, 0.0
  %v907 = vmax.f32 %v779, 0.0
  %v908 = vmax.f32 %v782, 0.0
  %v909 = vmax.f32 %v784, 0.0
  %v910 = vmax.f32 %v787, 0.0
  %v911 = vmax.f32 %v789, 0.0
  %v912 = vmax.f32 %v792, 0.0
  %v913 = vmax.f32 %v794, 0.0
  %v914 = vmax.f32 %v797, 0.0
  %v915 = vmax.f32 %v799, 0.0
  %v916 = vmax.f32 %v802, 0.0
  %v917 = vmax.f32 %v804, 0.0
  %v918 = vmax.f32 %v807, 0.0
  %v919 = vmax.f32 %v809, 0.0
  %v920 = vmax.f32 %v812, 0.0
  %v921 = vmax.f32 %v814, 0.0
  %v922 = vmax.f32 %v817, 0.0
  %v923 = vmax.f32 %v819, 0.0
  %v924 = vmax.f32 %v822, 0.0
  %v925 = vmax.f32 %v824, 0.0
  %v926 = vmax.f32 %v827, 0.0
  %v927 = vmax.f32 %v829, 0.0
  %v928 = vmax.f32 %v832, 0.0
  %v929 = vmax.f32 %v834, 0.0
  %v930 = vmax.f32 %v837, 0.0
  %v931 = vmax.f32 %v839, 0.0
  %v932 = vmax.f32 %v842, 0.0
  %v933 = vmax.f32 %v844, 0.0
  %v934 = vmax.f32 %v847, 0.0
  %v935 = vmax.f32 %v849, 0.0
  %v936 = vmax.f32 %v852, 0.0
  %v937 = vmax.f32 %v854, 0.0
  %v938 = vmax.f32 %v857, 0.0
  %v939 = vmax.f32 %v859, 0.0
  %v940 = vmax.f32 %v862, 0.0
  %v941 = vmax.f32 %v864, 0.0
  %v942 = vmax.f32 %v867, 0.0
  %v943 = vmax.f32 %v869, 0.0
  %v944 = vmax.f32 %v872, 0.0
  %v945 = vmax.f32 %v874, 0.0
  %v946 = vmax.f32 %v877, 0.0
  %v947 = vmax.f32 %v879, 0.0
  %v948 = vmax.f32 %v882, 0.0
  %v949 = vmax.f32 %v884, 0.0
  %v950 = vpack.c.bf16 %v887, %v886
  %v951 = vpack.c.bf16 %v889, %v888
  %v952 = vpack.c.bf16 %v891, %v890
  %v953 = vpack.c.bf16 %v893, %v892
  %v954 = vpack.c.bf16 %v895, %v894
  %v955 = vpack.c.bf16 %v897, %v896
  %v956 = vpack.c.bf16 %v899, %v898
  %v957 = vpack.c.bf16 %v901, %v900
  %v958 = vpack.c.bf16 %v903, %v902
  %v959 = vpack.c.bf16 %v905, %v904
  %v960 = vpack.c.bf16 %v907, %v906
  %v961 = vpack.c.bf16 %v909, %v908
  %v962 = vpack.c.bf16 %v911, %v910
  %v963 = vpack.c.bf16 %v913, %v912
  %v964 = vpack.c.bf16 %v915, %v914
  %v965 = vpack.c.bf16 %v917, %v916
  %v966 = vpack.c.bf16 %v919, %v918
  %v967 = vpack.c.bf16 %v921, %v920
  %v968 = vpack.c.bf16 %v923, %v922
  %v969 = vpack.c.bf16 %v925, %v924
  %v970 = vpack.c.bf16 %v927, %v926
  %v971 = vpack.c.bf16 %v929, %v928
  %v972 = vpack.c.bf16 %v931, %v930
  %v973 = vpack.c.bf16 %v933, %v932
  %v974 = vpack.c.bf16 %v935, %v934
  %v975 = vpack.c.bf16 %v937, %v936
  %v976 = vpack.c.bf16 %v939, %v938
  %v977 = vpack.c.bf16 %v941, %v940
  %v978 = vpack.c.bf16 %v943, %v942
  %v979 = vpack.c.bf16 %v945, %v944
  %v980 = vpack.c.bf16 %v947, %v946
  %v981 = vpack.c.bf16 %v949, %v948
  %v982 = vld [vmem:[%s5] sm:$0xf]
  %v983 = vld [vmem:[%s5 + $0x4] sm:$0xf]
  %v984 = vld [vmem:[%s5 + $0x8] sm:$0xf]
  %v985 = vld [vmem:[%s5 + $0xc] sm:$0xf]
  %v986 = vld [vmem:[%s5 + $0x10] sm:$0xf]
  %v987 = vld [vmem:[%s5 + $0x14] sm:$0xf]
  %v988 = vld [vmem:[%s5 + $0x18] sm:$0xf]
  %v989 = vld [vmem:[%s5 + $0x1c] sm:$0xf]
  %v990 = vld [vmem:[%s5 + $0x20] sm:$0xf]
  %v991 = vld [vmem:[%s5 + $0x24] sm:$0xf]
  %v992 = vld [vmem:[%s5 + $0x28] sm:$0xf]
  %v993 = vld [vmem:[%s5 + $0x2c] sm:$0xf]
  %v994 = vld [vmem:[%s5 + $0x30] sm:$0xf]
  %v995 = vld [vmem:[%s5 + $0x34] sm:$0xf]
  %v996 = vld [vmem:[%s5 + $0x38] sm:$0xf]
  %v997 = vld [vmem:[%s5 + $0x3c] sm:$0xf]
  %v998 = vld [vmem:[%s6] sm:$0x1]
  %v1000 = vperm.slane %v998, 0
  %v1018 = vunpack.c.l.b16 %v982
  %v1019 = vunpack.c.l.b16 %v983
  %v1020 = vunpack.c.l.b16 %v984
  %v1021 = vunpack.c.l.b16 %v985
  %v1022 = vunpack.c.l.b16 %v986
  %v1023 = vunpack.c.l.b16 %v987
  %v1024 = vunpack.c.l.b16 %v988
  %v1025 = vunpack.c.l.b16 %v989
  %v1026 = vunpack.c.l.b16 %v990
  %v1027 = vunpack.c.l.b16 %v991
  %v1028 = vunpack.c.l.b16 %v992
  %v1029 = vunpack.c.l.b16 %v993
  %v1030 = vunpack.c.l.b16 %v994
  %v1031 = vunpack.c.l.b16 %v995
  %v1032 = vunpack.c.l.b16 %v996
  %v1033 = vunpack.c.l.b16 %v997
  %v1034 = vpack.c.b16 %v1019, %v1018
  %v1035 = vpack.c.b16 %v1021, %v1020
  %v1036 = vpack.c.b16 %v1023, %v1022
  %v1037 = vpack.c.b16 %v1025, %v1024
  %v1038 = vpack.c.b16 %v1027, %v1026
  %v1039 = vpack.c.b16 %v1029, %v1028
  %v1040 = vpack.c.b16 %v1031, %v1030
  %v1041 = vpack.c.b16 %v1033, %v1032
  %1050 = vmatpush.bf16.msra.mxu0 %v1041
  %1051 = vmatpush.bf16.msra.mxu0 %v1040
  %1052 = vmatpush.bf16.msra.mxu0 %v1039
  %1053 = vmatpush.bf16.msra.mxu0 %v1038
  %1054 = vmatpush.bf16.msra.mxu0 %v1037
  %1055 = vmatpush.bf16.msra.mxu0 %v1036
  %1056 = vmatpush.bf16.msra.mxu0 %v1035
  %1057 = vmatpush.bf16.msra.mxu0 %v1034
  %1058 = vmatmul.bf16.gmra.mxu0 %v950
  %v1059 = vpop.f32.mrf.mxu0
  %v1060 = vadd.f32 %v1000, %v1059
  %v1061 = vpop.f32.mrf.mxu0
  %v1062 = vadd.f32 %v1000, %v1061
  %1063 = vmatmul.bf16.gmra.mxu0 %v951
  %v1064 = vpop.f32.mrf.mxu0
  %v1065 = vadd.f32 %v1000, %v1064
  %v1066 = vpop.f32.mrf.mxu0
  %v1067 = vadd.f32 %v1000, %v1066
  %1068 = vmatmul.bf16.gmra.mxu0 %v952
  %v1069 = vpop.f32.mrf.mxu0
  %v1070 = vadd.f32 %v1000, %v1069
  %v1071 = vpop.f32.mrf.mxu0
  %v1072 = vadd.f32 %v1000, %v1071
  %1073 = vmatmul.bf16.gmra.mxu0 %v953
  %v1074 = vpop.f32.mrf.mxu0
  %v1075 = vadd.f32 %v1000, %v1074
  %v1076 = vpop.f32.mrf.mxu0
  %v1077 = vadd.f32 %v1000, %v1076
  %1078 = vmatmul.bf16.gmra.mxu0 %v954
  %v1079 = vpop.f32.mrf.mxu0
  %v1080 = vadd.f32 %v1000, %v1079
  %v1081 = vpop.f32.mrf.mxu0
  %v1082 = vadd.f32 %v1000, %v1081
  %1083 = vmatmul.bf16.gmra.mxu0 %v955
  %v1084 = vpop.f32.mrf.mxu0
  %v1085 = vadd.f32 %v1000, %v1084
  %v1086 = vpop.f32.mrf.mxu0
  %v1087 = vadd.f32 %v1000, %v1086
  %1088 = vmatmul.bf16.gmra.mxu0 %v956
  %v1089 = vpop.f32.mrf.mxu0
  %v1090 = vadd.f32 %v1000, %v1089
  %v1091 = vpop.f32.mrf.mxu0
  %v1092 = vadd.f32 %v1000, %v1091
  %1093 = vmatmul.bf16.gmra.mxu0 %v957
  %v1094 = vpop.f32.mrf.mxu0
  %v1095 = vadd.f32 %v1000, %v1094
  %v1096 = vpop.f32.mrf.mxu0
  %v1097 = vadd.f32 %v1000, %v1096
  %1098 = vmatmul.bf16.gmra.mxu0 %v958
  %v1099 = vpop.f32.mrf.mxu0
  %v1100 = vadd.f32 %v1000, %v1099
  %v1101 = vpop.f32.mrf.mxu0
  %v1102 = vadd.f32 %v1000, %v1101
  %1103 = vmatmul.bf16.gmra.mxu0 %v959
  %v1104 = vpop.f32.mrf.mxu0
  %v1105 = vadd.f32 %v1000, %v1104
  %v1106 = vpop.f32.mrf.mxu0
  %v1107 = vadd.f32 %v1000, %v1106
  %1108 = vmatmul.bf16.gmra.mxu0 %v960
  %v1109 = vpop.f32.mrf.mxu0
  %v1110 = vadd.f32 %v1000, %v1109
  %v1111 = vpop.f32.mrf.mxu0
  %v1112 = vadd.f32 %v1000, %v1111
  %1113 = vmatmul.bf16.gmra.mxu0 %v961
  %v1114 = vpop.f32.mrf.mxu0
  %v1115 = vadd.f32 %v1000, %v1114
  %v1116 = vpop.f32.mrf.mxu0
  %v1117 = vadd.f32 %v1000, %v1116
  %1118 = vmatmul.bf16.gmra.mxu0 %v962
  %v1119 = vpop.f32.mrf.mxu0
  %v1120 = vadd.f32 %v1000, %v1119
  %v1121 = vpop.f32.mrf.mxu0
  %v1122 = vadd.f32 %v1000, %v1121
  %1123 = vmatmul.bf16.gmra.mxu0 %v963
  %v1124 = vpop.f32.mrf.mxu0
  %v1125 = vadd.f32 %v1000, %v1124
  %v1126 = vpop.f32.mrf.mxu0
  %v1127 = vadd.f32 %v1000, %v1126
  %1128 = vmatmul.bf16.gmra.mxu0 %v964
  %v1129 = vpop.f32.mrf.mxu0
  %v1130 = vadd.f32 %v1000, %v1129
  %v1131 = vpop.f32.mrf.mxu0
  %v1132 = vadd.f32 %v1000, %v1131
  %1133 = vmatmul.bf16.gmra.mxu0 %v965
  %v1134 = vpop.f32.mrf.mxu0
  %v1135 = vadd.f32 %v1000, %v1134
  %v1136 = vpop.f32.mrf.mxu0
  %v1137 = vadd.f32 %v1000, %v1136
  %1138 = vmatmul.bf16.gmra.mxu0 %v966
  %v1139 = vpop.f32.mrf.mxu0
  %v1140 = vadd.f32 %v1000, %v1139
  %v1141 = vpop.f32.mrf.mxu0
  %v1142 = vadd.f32 %v1000, %v1141
  %1143 = vmatmul.bf16.gmra.mxu0 %v967
  %v1144 = vpop.f32.mrf.mxu0
  %v1145 = vadd.f32 %v1000, %v1144
  %v1146 = vpop.f32.mrf.mxu0
  %v1147 = vadd.f32 %v1000, %v1146
  %1148 = vmatmul.bf16.gmra.mxu0 %v968
  %v1149 = vpop.f32.mrf.mxu0
  %v1150 = vadd.f32 %v1000, %v1149
  %v1151 = vpop.f32.mrf.mxu0
  %v1152 = vadd.f32 %v1000, %v1151
  %1153 = vmatmul.bf16.gmra.mxu0 %v969
  %v1154 = vpop.f32.mrf.mxu0
  %v1155 = vadd.f32 %v1000, %v1154
  %v1156 = vpop.f32.mrf.mxu0
  %v1157 = vadd.f32 %v1000, %v1156
  %1158 = vmatmul.bf16.gmra.mxu0 %v970
  %v1159 = vpop.f32.mrf.mxu0
  %v1160 = vadd.f32 %v1000, %v1159
  %v1161 = vpop.f32.mrf.mxu0
  %v1162 = vadd.f32 %v1000, %v1161
  %1163 = vmatmul.bf16.gmra.mxu0 %v971
  %v1164 = vpop.f32.mrf.mxu0
  %v1165 = vadd.f32 %v1000, %v1164
  %v1166 = vpop.f32.mrf.mxu0
  %v1167 = vadd.f32 %v1000, %v1166
  %1168 = vmatmul.bf16.gmra.mxu0 %v972
  %v1169 = vpop.f32.mrf.mxu0
  %v1170 = vadd.f32 %v1000, %v1169
  %v1171 = vpop.f32.mrf.mxu0
  %v1172 = vadd.f32 %v1000, %v1171
  %1173 = vmatmul.bf16.gmra.mxu0 %v973
  %v1174 = vpop.f32.mrf.mxu0
  %v1175 = vadd.f32 %v1000, %v1174
  %v1176 = vpop.f32.mrf.mxu0
  %v1177 = vadd.f32 %v1000, %v1176
  %1178 = vmatmul.bf16.gmra.mxu0 %v974
  %v1179 = vpop.f32.mrf.mxu0
  %v1180 = vadd.f32 %v1000, %v1179
  %v1181 = vpop.f32.mrf.mxu0
  %v1182 = vadd.f32 %v1000, %v1181
  %1183 = vmatmul.bf16.gmra.mxu0 %v975
  %v1184 = vpop.f32.mrf.mxu0
  %v1185 = vadd.f32 %v1000, %v1184
  %v1186 = vpop.f32.mrf.mxu0
  %v1187 = vadd.f32 %v1000, %v1186
  %1188 = vmatmul.bf16.gmra.mxu0 %v976
  %v1189 = vpop.f32.mrf.mxu0
  %v1190 = vadd.f32 %v1000, %v1189
  %v1191 = vpop.f32.mrf.mxu0
  %v1192 = vadd.f32 %v1000, %v1191
  %1193 = vmatmul.bf16.gmra.mxu0 %v977
  %v1194 = vpop.f32.mrf.mxu0
  %v1195 = vadd.f32 %v1000, %v1194
  %v1196 = vpop.f32.mrf.mxu0
  %v1197 = vadd.f32 %v1000, %v1196
  %1198 = vmatmul.bf16.gmra.mxu0 %v978
  %v1199 = vpop.f32.mrf.mxu0
  %v1200 = vadd.f32 %v1000, %v1199
  %v1201 = vpop.f32.mrf.mxu0
  %v1202 = vadd.f32 %v1000, %v1201
  %1203 = vmatmul.bf16.gmra.mxu0 %v979
  %v1204 = vpop.f32.mrf.mxu0
  %v1205 = vadd.f32 %v1000, %v1204
  %v1206 = vpop.f32.mrf.mxu0
  %v1207 = vadd.f32 %v1000, %v1206
  %1208 = vmatmul.bf16.gmra.mxu0 %v980
  %v1209 = vpop.f32.mrf.mxu0
  %v1210 = vadd.f32 %v1000, %v1209
  %v1211 = vpop.f32.mrf.mxu0
  %v1212 = vadd.f32 %v1000, %v1211
  %1213 = vmatmul.bf16.gmra.mxu0 %v981
  %v1214 = vpop.f32.mrf.mxu0
  %v1215 = vadd.f32 %v1000, %v1214
  %v1216 = vpop.f32.mrf.mxu0
  %v1217 = vadd.f32 %v1000, %v1216
  %1218 = vdwg.mxu0
  %1219 = vst [vmem:[%s7] sm:$0xff] %v1060
  %1220 = vst [vmem:[%s7 + $0x8] sm:$0xff] %v1062
  %1221 = vst [vmem:[%s7 + $0x10] sm:$0xff] %v1065
  %1222 = vst [vmem:[%s7 + $0x18] sm:$0xff] %v1067
  %1223 = vst [vmem:[%s7 + $0x20] sm:$0xff] %v1070
  %1224 = vst [vmem:[%s7 + $0x28] sm:$0xff] %v1072
  %1225 = vst [vmem:[%s7 + $0x30] sm:$0xff] %v1075
  %1226 = vst [vmem:[%s7 + $0x38] sm:$0xff] %v1077
  %1227 = vst [vmem:[%s7 + $0x40] sm:$0xff] %v1080
  %1228 = vst [vmem:[%s7 + $0x48] sm:$0xff] %v1082
  %1229 = vst [vmem:[%s7 + $0x50] sm:$0xff] %v1085
  %1230 = vst [vmem:[%s7 + $0x58] sm:$0xff] %v1087
  %1231 = vst [vmem:[%s7 + $0x60] sm:$0xff] %v1090
  %1232 = vst [vmem:[%s7 + $0x68] sm:$0xff] %v1092
  %1233 = vst [vmem:[%s7 + $0x70] sm:$0xff] %v1095
  %1234 = vst [vmem:[%s7 + $0x78] sm:$0xff] %v1097
  %1235 = vst [vmem:[%s7 + $0x80] sm:$0xff] %v1100
  %1236 = vst [vmem:[%s7 + $0x88] sm:$0xff] %v1102
  %1237 = vst [vmem:[%s7 + $0x90] sm:$0xff] %v1105
  %1238 = vst [vmem:[%s7 + $0x98] sm:$0xff] %v1107
  %1239 = vst [vmem:[%s7 + $0xa0] sm:$0xff] %v1110
  %1240 = vst [vmem:[%s7 + $0xa8] sm:$0xff] %v1112
  %1241 = vst [vmem:[%s7 + $0xb0] sm:$0xff] %v1115
  %1242 = vst [vmem:[%s7 + $0xb8] sm:$0xff] %v1117
  %1243 = vst [vmem:[%s7 + $0xc0] sm:$0xff] %v1120
  %1244 = vst [vmem:[%s7 + $0xc8] sm:$0xff] %v1122
  %1245 = vst [vmem:[%s7 + $0xd0] sm:$0xff] %v1125
  %1246 = vst [vmem:[%s7 + $0xd8] sm:$0xff] %v1127
  %1247 = vst [vmem:[%s7 + $0xe0] sm:$0xff] %v1130
  %1248 = vst [vmem:[%s7 + $0xe8] sm:$0xff] %v1132
  %1249 = vst [vmem:[%s7 + $0xf0] sm:$0xff] %v1135
  %1250 = vst [vmem:[%s7 + $0xf8] sm:$0xff] %v1137
  %1251 = vst [vmem:[%s7 + $0x100] sm:$0xff] %v1140
  %1252 = vst [vmem:[%s7 + $0x108] sm:$0xff] %v1142
  %1253 = vst [vmem:[%s7 + $0x110] sm:$0xff] %v1145
  %1254 = vst [vmem:[%s7 + $0x118] sm:$0xff] %v1147
  %1255 = vst [vmem:[%s7 + $0x120] sm:$0xff] %v1150
  %1256 = vst [vmem:[%s7 + $0x128] sm:$0xff] %v1152
  %1257 = vst [vmem:[%s7 + $0x130] sm:$0xff] %v1155
  %1258 = vst [vmem:[%s7 + $0x138] sm:$0xff] %v1157
  %1259 = vst [vmem:[%s7 + $0x140] sm:$0xff] %v1160
  %1260 = vst [vmem:[%s7 + $0x148] sm:$0xff] %v1162
  %1261 = vst [vmem:[%s7 + $0x150] sm:$0xff] %v1165
  %1262 = vst [vmem:[%s7 + $0x158] sm:$0xff] %v1167
  %1263 = vst [vmem:[%s7 + $0x160] sm:$0xff] %v1170
  %1264 = vst [vmem:[%s7 + $0x168] sm:$0xff] %v1172
  %1265 = vst [vmem:[%s7 + $0x170] sm:$0xff] %v1175
  %1266 = vst [vmem:[%s7 + $0x178] sm:$0xff] %v1177
  %1267 = vst [vmem:[%s7 + $0x180] sm:$0xff] %v1180
  %1268 = vst [vmem:[%s7 + $0x188] sm:$0xff] %v1182
  %1269 = vst [vmem:[%s7 + $0x190] sm:$0xff] %v1185
  %1270 = vst [vmem:[%s7 + $0x198] sm:$0xff] %v1187
  %1271 = vst [vmem:[%s7 + $0x1a0] sm:$0xff] %v1190
  %1272 = vst [vmem:[%s7 + $0x1a8] sm:$0xff] %v1192
  %1273 = vst [vmem:[%s7 + $0x1b0] sm:$0xff] %v1195
  %1274 = vst [vmem:[%s7 + $0x1b8] sm:$0xff] %v1197
  %1275 = vst [vmem:[%s7 + $0x1c0] sm:$0xff] %v1200
  %1276 = vst [vmem:[%s7 + $0x1c8] sm:$0xff] %v1202
  %1277 = vst [vmem:[%s7 + $0x1d0] sm:$0xff] %v1205
  %1278 = vst [vmem:[%s7 + $0x1d8] sm:$0xff] %v1207
  %1279 = vst [vmem:[%s7 + $0x1e0] sm:$0xff] %v1210
  %1280 = vst [vmem:[%s7 + $0x1e8] sm:$0xff] %v1212
  %1281 = vst [vmem:[%s7 + $0x1f0] sm:$0xff] %v1215
  %1282 = vst [vmem:[%s7 + $0x1f8] sm:$0xff] %v1217
  // Predicated region
  $region30: #{_mlp_forward_impl.1} parent=0 // pred_check
    _
  $region31: #{_mlp_forward_impl.1} parent=0 // pred_check_branch
    %1284 = sbr.rel (0) target = $region33
  $region32: #{_mlp_forward_impl.1} parent=0 // pred_region
    _
  $region33: #{_mlp_forward_impl.1} parent=0 // pred_fallthru
    _
  // Predicated region
  $region34: #{_mlp_forward_impl.1} parent=0 // pred_check
    _
  $region35: #{_mlp_forward_impl.1} parent=0 // pred_check_branch
    %1286 = sbr.rel (0) target = $region37
  $region36: #{_mlp_forward_impl.1} parent=0 // pred_region
    _
  $region37: #{_mlp_forward_impl.1} parent=0 // pred_fallthru
    _

</llo_original>
